<compile_context>
chip_gen: v7x
topology: tpu7x:2x2x1
jax: 0.10.0
libtpu: 0.0.40
codegen_flags: <defaults>
</compile_context>

<pallas_src>
import functools

import jax
import jax.numpy as jnp
from jax import lax
from jax.experimental import pallas as pl
from jax.experimental.pallas import tpu as pltpu

MXU_DTYPE = jnp.bfloat16     # MXU operand dtype; accumulation stays float32.
INTER_DTYPE = jnp.bfloat16   # dtype of q/k/v intermediates and the context output.

_MIB = 1 << 20


# ----------------------------------------------------------------------------
# VMEM budgeting helpers (sized from the actual buffers, clamped to a value
# that is legal on every TPU generation; over-requesting is a cap, not an
# allocation).
# ----------------------------------------------------------------------------
def _clamp_vmem(est_bytes):
    return int(min(max(est_bytes * 3 // 2, 32 * _MIB), 64 * _MIB))


def _vmem_bytes_qkv(tm, h):
    w = 2 * (h * 3 * h * 2)          # bf16 fused weight, double-buffered
    x = 2 * (tm * h * 4)             # f32 activation tile, double-buffered
    bias = 2 * (3 * h * 4)           # f32 fused bias
    outs = 2 * 3 * (tm * h * 2)      # bf16 q/k/v tiles, double-buffered
    y = tm * 3 * h * 4               # f32 matmul-result transient
    return w + x + bias + outs + y


def _vmem_bytes_attn(s, blk):
    qkv = 2 * 3 * (s * blk * 2)      # bf16 q/k/v blocks, double-buffered
    out = 2 * (s * blk * 2)          # bf16 context block, double-buffered
    tables = 2 * 3 * (s * blk * 4)   # f32 cos / sin_a / sin_b slabs
    rot = 2 * (s * blk * 4)          # f32 rotated q/k slabs
    scores = 2 * 2 * (s * s * 4)     # ~2 heads of f32 scores+exp in flight
    return qkv + out + tables + rot + scores


# ----------------------------------------------------------------------------
# Kernel 1: fused Q/K/V linear projection, row-tiled over [B*S, H]
# ----------------------------------------------------------------------------
def qkv_proj_kernel(x_ref, w_ref, b_ref, q_ref, k_ref, v_ref, *, hidden,
                    mxu_dtype):
    x = x_ref[...].astype(mxu_dtype)                                 # [TM, H]
    y = jnp.dot(x, w_ref[...], preferred_element_type=jnp.float32)   # [TM, 3H]
    y = y + b_ref[...]
    q_ref[...] = y[:, :hidden].astype(q_ref.dtype)
    k_ref[...] = y[:, hidden:2 * hidden].astype(k_ref.dtype)
    v_ref[...] = y[:, 2 * hidden:].astype(v_ref.dtype)


def qkv_projection(x2d, w_fused, b_fused, hidden, mxu_dtype, inter_dtype):
    n, h = x2d.shape
    assert h == hidden
    tm = n if n <= 512 else 512                       # row tile (M axis)
    grid = (pl.cdiv(n, tm),)
    out = jax.ShapeDtypeStruct((n, h), inter_dtype)
    x_spec = pl.BlockSpec((tm, h), lambda i: (i, 0))
    w_spec = pl.BlockSpec((h, 3 * h), lambda i: (0, 0))   # resident across grid
    b_spec = pl.BlockSpec((1, 3 * h), lambda i: (0, 0))
    o_spec = pl.BlockSpec((tm, h), lambda i: (i, 0))
    return pl.pallas_call(
        functools.partial(qkv_proj_kernel, hidden=hidden, mxu_dtype=mxu_dtype),
        out_shape=(out, out, out),
        grid=grid,
        in_specs=[x_spec, w_spec, b_spec],
        out_specs=(o_spec, o_spec, o_spec),
        compiler_params=pltpu.CompilerParams(
            dimension_semantics=("parallel",),
            vmem_limit_bytes=_clamp_vmem(_vmem_bytes_qkv(tm, h))),
    )(x2d, w_fused, b_fused)


# ----------------------------------------------------------------------------
# Kernel 2: per-(batch, head-group) scaled-dot-product attention with rotary
# ----------------------------------------------------------------------------
def _rotary_slab(x, cos, sin_a, sin_b, head_dim):
    """Rotary on a whole [S, hg*D] head-group slab (f32).

    rotate_half is realized with two slab-wide lane rotations (XLU) and two
    half-masked, sign-folded sin tables built in the wrapper:
      out[p] = x[p]*cos[p] + x[p + D/2]*sin_a[p] + x[p - D/2]*sin_b[p]
    sin_a is nonzero only on first-half lanes of each head (value -sin),
    sin_b only on second-half lanes (value +sin), so the wrap-around terms of
    the rolls are multiplied by zero.
    pltpu.roll follows jnp.roll semantics: roll(x, s)[p] = x[(p - s) % n].
    """
    blk = x.shape[-1]
    half = head_dim // 2
    x_plus = pltpu.roll(x, blk - half, axis=1)     # x[(p + half) % blk]
    x_minus = pltpu.roll(x, half, axis=1)          # x[(p - half) % blk]
    return x * cos + x_plus * sin_a + x_minus * sin_b


def attn_kernel(q_ref, k_ref, v_ref, cos_ref, sina_ref, sinb_ref, o_ref, *,
                head_dim, heads_per_block, mxu_dtype):
    cos = cos_ref[...]            # [S, HG*D] f32
    sin_a = sina_ref[...]         # [S, HG*D] f32 (first-half lanes, -sin)
    sin_b = sinb_ref[...]         # [S, HG*D] f32 (second-half lanes, +sin)
    scale = head_dim ** -0.5

    qb = q_ref[0].astype(jnp.float32)   # [S, HG*D]
    kb = k_ref[0].astype(jnp.float32)
    vb = v_ref[0]                       # stays bf16 for the PV matmul

    # Scale-before-rotary (as in PyTorch); both applied once on the full slab.
    q_rot = _rotary_slab(qb * scale, cos, sin_a, sin_b, head_dim)
    k_rot = _rotary_slab(kb, cos, sin_a, sin_b, head_dim)

    outs = []
    for h in range(heads_per_block):
        lo = h * head_dim
        hi = lo + head_dim
        q = q_rot[:, lo:hi].astype(mxu_dtype)
        k = k_rot[:, lo:hi].astype(mxu_dtype)
        v = vb[:, lo:hi]

        # scores = q @ k^T, expressed by contracting the shared D axis directly
        # (no explicit transpose of k).
        s = lax.dot_general(q, k,
                            dimension_numbers=(((1,), (1,)), ((), ())),
                            preferred_element_type=jnp.float32)      # [S, S]

        m = jnp.max(s, axis=-1, keepdims=True)
        e = jnp.exp(s - m)
        denom = jnp.sum(e, axis=-1, keepdims=True)                   # [S, 1]

        ctx = jnp.dot(e.astype(mxu_dtype), v,
                      preferred_element_type=jnp.float32)            # [S, D]
        # Deferred softmax normalization; reciprocal runs on the EUP slot.
        outs.append(ctx * pl.reciprocal(denom, approx=True))

    # Single lane-dense store of the whole head-group slab.
    o_ref[0] = jnp.concatenate(outs, axis=-1).astype(o_ref.dtype)


def _heads_per_block(num_heads, head_dim, hidden, seq_len, max_unroll=8):
    """Heads per grid step: >=128-lane blocks, unroll capped, VMEM-budgeted."""
    legal = []
    for hg in range(1, min(num_heads, max_unroll) + 1):
        if num_heads % hg:
            continue
        blk = hg * head_dim
        if blk % 128 == 0 or blk == hidden:
            legal.append(hg)
    if not legal:
        return num_heads            # full-H block is always a legal block width
    budget = 40 * _MIB
    for hg in reversed(legal):      # largest group that fits the VMEM budget
        if _vmem_bytes_attn(seq_len, hg * head_dim) <= budget:
            return hg
    return legal[0]


def rotary_attention(q, k, v, prepared, mxu_dtype, out_dtype):
    """q, k, v: [B, S, H] bf16; returns context [B, S, H] in out_dtype."""
    b, s, h = q.shape
    d = prepared["head_dim"]
    hg = prepared["heads_per_block"]
    num_heads = prepared["num_heads"]
    blk = hg * d
    qkv_spec = pl.BlockSpec((1, s, blk), lambda bi, gi: (bi, 0, gi))
    tab_spec = pl.BlockSpec((s, blk), lambda bi, gi: (0, 0))
    return pl.pallas_call(
        functools.partial(attn_kernel, head_dim=d, heads_per_block=hg,
                          mxu_dtype=mxu_dtype),
        out_shape=jax.ShapeDtypeStruct((b, s, h), out_dtype),
        grid=(b, num_heads // hg),
        in_specs=[qkv_spec, qkv_spec, qkv_spec, tab_spec, tab_spec, tab_spec],
        out_specs=qkv_spec,
        compiler_params=pltpu.CompilerParams(
            dimension_semantics=("parallel", "parallel"),
            vmem_limit_bytes=_clamp_vmem(_vmem_bytes_attn(s, blk))),
    )(q, k, v, prepared["cos"], prepared["sin_a"], prepared["sin_b"])


# ----------------------------------------------------------------------------
# One-time preparation (hoisted off the per-forward critical path)
# ----------------------------------------------------------------------------
def prepare_esm_attention(params, num_heads, seq_len, mxu_dtype=MXU_DTYPE):
    h = params["wq"].shape[0]
    d = h // num_heads
    hg = _heads_per_block(num_heads, d, h, seq_len)

    # Fused QKV weight/bias: one weight DMA and one MXU matmul per row tile.
    w_fused = jnp.concatenate(
        [params["wq"], params["wk"], params["wv"]], axis=1).astype(mxu_dtype)
    b_fused = jnp.concatenate(
        [params["bq"], params["bk"], params["bv"]]).reshape(1, 3 * h)
    b_fused = b_fused.astype(jnp.float32)

    # Rotary tables (RotaryEmbedding._update_cos_sin_tables), tiled to the
    # head-group slab width.  rotate_half's sign and half-selection are folded
    # into two masked sin tables so the kernel only needs two lane rotations.
    inv_freq = 1.0 / (10000.0 ** (jnp.arange(0, d, 2, dtype=jnp.float32) / d))
    t = jnp.arange(seq_len, dtype=jnp.float32)
    freqs = jnp.outer(t, inv_freq)                                  # [S, D/2]
    cos = jnp.cos(jnp.concatenate([freqs, freqs], axis=-1))         # [S, D]
    sin_half = jnp.sin(freqs)
    zeros = jnp.zeros_like(sin_half)
    sin_a = jnp.concatenate([-sin_half, zeros], axis=-1)   # pairs with x[p+D/2]
    sin_b = jnp.concatenate([zeros, sin_half], axis=-1)    # pairs with x[p-D/2]

    return dict(
        w_fused=w_fused, b_fused=b_fused,
        cos=jnp.tile(cos, (1, hg)),
        sin_a=jnp.tile(sin_a, (1, hg)),
        sin_b=jnp.tile(sin_b, (1, hg)),
        num_heads=num_heads, head_dim=d, hidden=h,
        heads_per_block=hg, seq_len=seq_len)


# ----------------------------------------------------------------------------
# Module forward
# ----------------------------------------------------------------------------
def esm_self_attention_forward(hidden_states, prepared, mxu_dtype=MXU_DTYPE,
                               out_dtype=INTER_DTYPE):
    """hidden_states: [B, S, H] float32. Returns context_layer [B, S, H]."""
    b, s, h = hidden_states.shape
    assert s == prepared["seq_len"] and h == prepared["hidden"]

    x2d = hidden_states.reshape(b * s, h)
    q2d, k2d, v2d = qkv_projection(x2d, prepared["w_fused"],
                                   prepared["b_fused"], h, mxu_dtype,
                                   INTER_DTYPE)

    # No head-split / merge transposes: heads are contiguous D-wide column
    # slabs of [B, S, H] and are indexed directly by the attention BlockSpecs.
    q = q2d.reshape(b, s, h)
    k = k2d.reshape(b, s, h)
    v = v2d.reshape(b, s, h)

    return rotary_attention(q, k, v, prepared, mxu_dtype, out_dtype)


# ----------------------------------------------------------------------------
# Pure-JAX (f32) reference mirroring the PyTorch module
# ----------------------------------------------------------------------------
def reference_forward(hidden_states, params, num_heads):
    b, s, h = hidden_states.shape
    d = h // num_heads
    inv_freq = 1.0 / (10000.0 ** (jnp.arange(0, d, 2, dtype=jnp.float32) / d))
    t = jnp.arange(s, dtype=jnp.float32)
    freqs = jnp.outer(t, inv_freq)
    emb = jnp.concatenate([freqs, freqs], axis=-1)
    cos, sin = jnp.cos(emb)[None, None], jnp.sin(emb)[None, None]

    def lin(x, w, bias):
        return x @ w + bias

    def split_heads(x):
        return x.reshape(b, s, num_heads, d).transpose(0, 2, 1, 3)

    q = split_heads(lin(hidden_states, params["wq"], params["bq"])) * (d ** -0.5)
    k = split_heads(lin(hidden_states, params["wk"], params["bk"]))
    v = split_heads(lin(hidden_states, params["wv"], params["bv"]))

    def rot_half(x):
        x1, x2 = jnp.split(x, 2, axis=-1)
        return jnp.concatenate([-x2, x1], axis=-1)

    q = q * cos + rot_half(q) * sin
    k = k * cos + rot_half(k) * sin
    scores = jnp.einsum("bhqd,bhkd->bhqk", q, k)
    probs = jax.nn.softmax(scores, axis=-1)
    ctx = jnp.einsum("bhqk,bhkd->bhqd", probs, v)
    return ctx.transpose(0, 2, 1, 3).reshape(b, s, h)


if __name__ == "__main__":
    B, S, H, NUM_HEADS = 2, 8, 32, 4  # head_dim = 8

    key = jax.random.PRNGKey(0)
    ks = jax.random.split(key, 7)
    w_scale = H ** -0.5
    params = {
        "wq": jax.random.normal(ks[0], (H, H), jnp.float32) * w_scale,
        "wk": jax.random.normal(ks[1], (H, H), jnp.float32) * w_scale,
        "wv": jax.random.normal(ks[2], (H, H), jnp.float32) * w_scale,
        "bq": jax.random.normal(ks[3], (H,), jnp.float32) * 0.01,
        "bk": jax.random.normal(ks[4], (H,), jnp.float32) * 0.01,
        "bv": jax.random.normal(ks[5], (H,), jnp.float32) * 0.01,
    }
    hidden_states = jax.random.normal(ks[6], (B, S, H), jnp.float32)

    prepared = prepare_esm_attention(params, NUM_HEADS, S)
    out = esm_self_attention_forward(hidden_states, prepared)
    out = jax.block_until_ready(out)

    ref = reference_forward(hidden_states, params, NUM_HEADS)
    assert out.shape == (B, S, H)
    # MXU operands and q/k/v/context intermediates are bf16 (f32 accumulation),
    # so compare with bf16-level tolerance against the exact f32 reference.
    assert jnp.allclose(out.astype(jnp.float32), ref, atol=5e-2, rtol=5e-2), \
        "mismatch vs reference"

    print("KERNEL_OK")
</pallas_src>

<mosaic_0001>
module attributes {stable_mosaic.version = 11 : i64} {
  func.func @qkv_proj_kernel(%arg0: i32, %arg1: memref<16x32xf32, #tpu.memory_space<vmem>>, %arg2: memref<32x96xbf16, #tpu.memory_space<vmem>>, %arg3: memref<1x96xf32, #tpu.memory_space<vmem>>, %arg4: memref<16x32xbf16, #tpu.memory_space<vmem>>, %arg5: memref<16x32xbf16, #tpu.memory_space<vmem>>, %arg6: memref<16x32xbf16, #tpu.memory_space<vmem>>) attributes {dimension_semantics = [#tpu.dimension_semantics<parallel>], iteration_bounds = array<i64: 1>, scalar_prefetch = 0 : i64, scratch_operands = 0 : i64, tpu.core_type = #tpu.core_type<tc>, window_params = [{transform_indices = @transform_0, window_bounds = array<i64: 16, 32>}, {pipeline_mode = #tpu.pipeline_mode<synchronous>, transform_indices = @transform_1, window_bounds = array<i64: 32, 96>}, {pipeline_mode = #tpu.pipeline_mode<synchronous>, transform_indices = @transform_2, window_bounds = array<i64: 1, 96>}, {transform_indices = @transform_3, window_bounds = array<i64: 16, 32>}, {transform_indices = @transform_4, window_bounds = array<i64: 16, 32>}, {transform_indices = @transform_5, window_bounds = array<i64: 16, 32>}]} {
    %c0 = arith.constant 0 : index
    %c0_0 = arith.constant 0 : index
    %0 = vector.load %arg1[%c0, %c0_0] : memref<16x32xf32, #tpu.memory_space<vmem>>, vector<16x32xf32>
    %1 = arith.truncf %0 : vector<16x32xf32> to vector<16x32xbf16>
    %c0_1 = arith.constant 0 : index
    %c0_2 = arith.constant 0 : index
    %2 = vector.load %arg2[%c0_1, %c0_2] : memref<32x96xbf16, #tpu.memory_space<vmem>>, vector<32x96xbf16>
    %cst = arith.constant dense<0.000000e+00> : vector<16x96xf32>
    %3 = tpu.matmul %1, %2, %cst {dimension_numbers = #tpu.dot_dimension_numbers<[1], [0], [0], [1], [0, 0, 1, 1], [], []>} : vector<16x32xbf16>, vector<32x96xbf16>, vector<16x96xf32> -> vector<16x96xf32>
    %c0_3 = arith.constant 0 : index
    %c0_4 = arith.constant 0 : index
    %4 = vector.load %arg3[%c0_3, %c0_4] : memref<1x96xf32, #tpu.memory_space<vmem>>, vector<1x96xf32>
    %5 = vector.broadcast %4 : vector<1x96xf32> to vector<16x96xf32>
    %6 = arith.addf %3, %5 : vector<16x96xf32>
    %7 = vector.extract_strided_slice %6 {offsets = [0, 0], sizes = [16, 32], strides = [1, 1]} : vector<16x96xf32> to vector<16x32xf32>
    %8 = arith.truncf %7 : vector<16x32xf32> to vector<16x32xbf16>
    %c0_5 = arith.constant 0 : index
    %c0_6 = arith.constant 0 : index
    %9 = vector.load %arg4[%c0_5, %c0_6] : memref<16x32xbf16, #tpu.memory_space<vmem>>, vector<16x32xbf16>
    tpu.vector_store %arg4[%c0_5, %c0_6], %8 {strides = array<i32>} : memref<16x32xbf16, #tpu.memory_space<vmem>>, vector<16x32xbf16>,
    %10 = vector.extract_strided_slice %6 {offsets = [0, 32], sizes = [16, 32], strides = [1, 1]} : vector<16x96xf32> to vector<16x32xf32>
    %11 = arith.truncf %10 : vector<16x32xf32> to vector<16x32xbf16>
    %c0_7 = arith.constant 0 : index
    %c0_8 = arith.constant 0 : index
    %12 = vector.load %arg5[%c0_7, %c0_8] : memref<16x32xbf16, #tpu.memory_space<vmem>>, vector<16x32xbf16>
    tpu.vector_store %arg5[%c0_7, %c0_8], %11 {strides = array<i32>} : memref<16x32xbf16, #tpu.memory_space<vmem>>, vector<16x32xbf16>,
    %13 = vector.extract_strided_slice %6 {offsets = [0, 64], sizes = [16, 32], strides = [1, 1]} : vector<16x96xf32> to vector<16x32xf32>
    %14 = arith.truncf %13 : vector<16x32xf32> to vector<16x32xbf16>
    %c0_9 = arith.constant 0 : index
    %c0_10 = arith.constant 0 : index
    %15 = vector.load %arg6[%c0_9, %c0_10] : memref<16x32xbf16, #tpu.memory_space<vmem>>, vector<16x32xbf16>
    tpu.vector_store %arg6[%c0_9, %c0_10], %14 {strides = array<i32>} : memref<16x32xbf16, #tpu.memory_space<vmem>>, vector<16x32xbf16>,
    return
  }
  func.func @transform_0(%arg0: i32) -> (i32, i32) {
    %c0_i32 = arith.constant 0 : i32
    %c0_i32_0 = arith.constant 0 : i32
    return %arg0, %c0_i32 : i32, i32
  }
  func.func @transform_1(%arg0: i32) -> (i32, i32) {
    %c0_i32 = arith.constant 0 : i32
    %c0_i32_0 = arith.constant 0 : i32
    %c0_i32_1 = arith.constant 0 : i32
    return %c0_i32, %c0_i32_0 : i32, i32
  }
  func.func @transform_2(%arg0: i32) -> (i32, i32) {
    %c0_i32 = arith.constant 0 : i32
    %c0_i32_0 = arith.constant 0 : i32
    %c0_i32_1 = arith.constant 0 : i32
    return %c0_i32, %c0_i32_0 : i32, i32
  }
  func.func @transform_3(%arg0: i32) -> (i32, i32) {
    %c0_i32 = arith.constant 0 : i32
    %c0_i32_0 = arith.constant 0 : i32
    return %arg0, %c0_i32 : i32, i32
  }
  func.func @transform_4(%arg0: i32) -> (i32, i32) {
    %c0_i32 = arith.constant 0 : i32
    %c0_i32_0 = arith.constant 0 : i32
    return %arg0, %c0_i32 : i32, i32
  }
  func.func @transform_5(%arg0: i32) -> (i32, i32) {
    %c0_i32 = arith.constant 0 : i32
    %c0_i32_0 = arith.constant 0 : i32
    return %arg0, %c0_i32 : i32, i32
  }
}

</mosaic_0001>

<llo_original>
// kernel: tpu_custom_call.1
$region0: #{tpu_custom_call.1}
  #allocation0 [shape = 'u32[]', space=smem, size = 0x4, offset = 0x4, fixed_abs, tag = 'smem constant byte address 0x4 - core index']
  #allocation1 [shape = 'u32[144,128]{1,0:T(1,128)}', space=vmem, size = 0x12000, scoped, tag = 'internal scratch']
  %s0 = inlined_call_operand.hbm [shape: f32[16,32], index: 0, kind: input, shape index: {}]
  %s1 = inlined_call_operand.hbm [shape: bf16[32,96], index: 1, kind: input, shape index: {}]
  %s2 = inlined_call_operand.vmem [shape: f32[1,96], index: 2, kind: input, shape index: {}]
  %s3 = inlined_call_operand.hbm [shape: bf16[16,32], index: 3, kind: output, shape index: {0}]
  %s4 = inlined_call_operand.hbm [shape: bf16[16,32], index: 4, kind: output, shape index: {1}]
  %s5 = inlined_call_operand.hbm [shape: bf16[16,32], index: 5, kind: output, shape index: {2}]
  %6 = xla_tuple %s3, %s4, %s5
  %s7 = sld [smem:[#allocation0]]
  $region46: #{tpu_custom_call.1} parent=0
    _
  %s9 = ssub.s32 1, %s7
  %s10 = scalar_select 0, %s9, %s7
  $region1: #{tpu_custom_call.1} parent=0
    #allocation2 [shape = 'u8[8192]{0}', space=vmem, size = 0x2000, scoped, tag = 'input window, operand 0, single buffered']
    #allocation3 [shape = 's32[1]{0}', space=sflag, size = 0x4, scoped, tag = 'scoped memory for tpu_custom_call.1']
    #allocation4 [shape = 's32[1]{0}', space=sflag, size = 0x4, scoped, tag = 'scoped memory for tpu_custom_call.1']
    #allocation5 [shape = 'u8[8192]{0}', space=vmem, size = 0x2000, scoped, tag = 'input window, operand 1, single buffered']
    #allocation6 [shape = 's32[1]{0}', space=sflag, size = 0x4, scoped, tag = 'scoped memory for tpu_custom_call.1']
    #allocation7 [shape = 'u8[4096]{0}', space=vmem, size = 0x1000, scoped, tag = 'output window, operand 0, single buffered']
    #allocation8 [shape = 'u8[4096]{0}', space=vmem, size = 0x1000, scoped, tag = 'output window, operand 1, single buffered']
    #allocation9 [shape = 's32[1]{0}', space=sflag, size = 0x4, scoped, tag = 'scoped memory for tpu_custom_call.1']
    #allocation10 [shape = 'u8[4096]{0}', space=vmem, size = 0x1000, scoped, tag = 'output window, operand 2, single buffered']
    %11 = vsyncpa [#allocation3], 0
    %12 = vsyncpa [#allocation6], 0
    %13 = vsyncpa [#allocation4], 0
    %14 = vsyncpa [#allocation9], 0
    // Predicated region
    $region2: #{tpu_custom_call.1} parent=1 // pred_check
      _
    $region3: #{tpu_custom_call.1} parent=1 // pred_check_branch
      %16 = sbr.rel (0) target = $region5
    $region4: #{tpu_custom_call.1} parent=1 // pred_region
      %s18 = ssub.s32 256, 256
      %19 = vsyncadd [#allocation3], %s18
      %s20 = sshll.u32 [#allocation2], 4
      %s21 = int_to_ptr.vmem [resolvable:$true] %s20
      %26 = dma.hbm_to_vmem [thread:$0]  %s0, 256, %s21, [#allocation3], 128, 128, 8
    $region5: #{tpu_custom_call.1} parent=1 // pred_fallthru
      _
    // Predicated region
    $region6: #{tpu_custom_call.1} parent=1 // pred_check
      _
    $region7: #{tpu_custom_call.1} parent=1 // pred_check_branch
      %28 = sbr.rel (0) target = $region9
    $region8: #{tpu_custom_call.1} parent=1 // pred_region
      %s30 = ssub.s32 256, 256
      %31 = vsyncadd [#allocation6], %s30
      %s32 = sshll.u32 [#allocation5], 4
      %s33 = int_to_ptr.vmem [resolvable:$true] %s32
      %38 = dma.hbm_to_vmem [thread:$0]  %s1, 256, %s33, [#allocation6], 64, 64, 4
    $region9: #{tpu_custom_call.1} parent=1 // pred_fallthru
      _
    // Predicated region
    $region10: #{tpu_custom_call.1} parent=1 // pred_check
      _
    $region11: #{tpu_custom_call.1} parent=1 // pred_check_branch
      %40 = sbr.rel (0) target = $region13
    $region12: #{tpu_custom_call.1} parent=1 // pred_region
      _
    $region13: #{tpu_custom_call.1} parent=1 // pred_fallthru
      _
    // Predicated region
    $region14: #{tpu_custom_call.1} parent=1 // pred_check
      _
    $region15: #{tpu_custom_call.1} parent=1 // pred_check_branch
      %42 = sbr.rel (0) target = $region17
    $region16: #{tpu_custom_call.1} parent=1 // pred_region
      %43 = dma.done [#allocation3], 256
    $region17: #{tpu_custom_call.1} parent=1 // pred_fallthru
      _
    // Predicated region
    $region18: #{tpu_custom_call.1} parent=1 // pred_check
      _
    $region19: #{tpu_custom_call.1} parent=1 // pred_check_branch
      %45 = sbr.rel (0) target = $region21
    $region20: #{tpu_custom_call.1} parent=1 // pred_region
      %46 = dma.done [#allocation6], 256
    $region21: #{tpu_custom_call.1} parent=1 // pred_fallthru
      _
    %v48 = vld [vmem:[#allocation2] sm:$0xff]
    %v49 = vld [vmem:[#allocation2 + $0x8] sm:$0xff]
    %v50 = vpack.c.bf16 %v49, %v48
    %v51 = vld [vmem:[#allocation5] sm:$0xf]
    %v52 = vld [vmem:[#allocation5 + $0x4] sm:$0xf]
    %v53 = vld [vmem:[#allocation5 + $0x8] sm:$0xf]
    %v54 = vld [vmem:[#allocation5 + $0xc] sm:$0xf]
    %v55 = vld [vmem:[%s2] sm:$0x1]
    %v57 = vlaneseq
    %v58 = vshrl.u32 %v57, 7
    %v59 = vsub.s32 0, %v58
    %v60 = vrot.slane %v55, %v59
    %v66 = vunpack.c.l.b16 %v51
    %v67 = vunpack.c.l.b16 %v52
    %v68 = vunpack.c.l.b16 %v53
    %v69 = vunpack.c.l.b16 %v54
    %v70 = vpack.c.b16 %v67, %v66
    %v71 = vpack.c.b16 %v69, %v68
    %vm74 = vcmask 261120
    %v76 = vsel %vm74, %v50, 0
    %78 = vmatprep.subr.bf16.mxu0 0
    %79 = vmatpush1.bf16.msra.mxu0 %v70
    %80 = vmatprep.subr.bf16.mxu0 0
    %81 = vmatpush1.bf16.msra.mxu0 %v71
    %82 = vmatprep.subr.bf16.mxu0 0
    %83 = vmatpush1.bf16.msra.mxu0 0
    %84 = vmatprep.subr.bf16.mxu0 0
    %85 = vmatpush1.bf16.msra.mxu0 0
    %86 = vmatprep.subr.bf16.mxu0 0
    %87 = vmatpush1.bf16.msra.mxu0 0
    %88 = vmatprep.subr.bf16.mxu0 0
    %89 = vmatpush1.bf16.msra.mxu0 0
    %90 = vmatprep.subr.bf16.mxu0 0
    %91 = vmatpush1.bf16.msra.mxu0 0
    %92 = vmatprep.subr.bf16.mxu0 0
    %93 = vmatpush1.bf16.msra.mxu0 0
    %94 = vmatprep.subr.bf16.mxu0 0
    %95 = vmatpush1.bf16.msra.mxu0 0
    %96 = vmatprep.subr.bf16.mxu0 0
    %97 = vmatpush1.bf16.msra.mxu0 0
    %98 = vmatprep.subr.bf16.mxu0 0
    %99 = vmatpush1.bf16.msra.mxu0 0
    %100 = vmatprep.subr.bf16.mxu0 0
    %101 = vmatpush1.bf16.msra.mxu0 0
    %102 = vmatprep.subr.bf16.mxu0 0
    %103 = vmatpush1.bf16.msra.mxu0 0
    %104 = vmatprep.subr.bf16.mxu0 0
    %105 = vmatpush1.bf16.msra.mxu0 0
    %106 = vmatprep.subr.bf16.mxu0 0
    %107 = vmatpush1.bf16.msra.mxu0 0
    %108 = vmatprep.subr.bf16.mxu0 0
    %109 = vmatpush1.bf16.msra.mxu0 0
    %110 = vmatprep.mubr.bf16.mxu0 0
    %111 = vmatmul.mubr.bf16.gmra.mrb[0].mxu0 %v76
    %v112 = vpop.f32.mrb[0].mxu0
    %v113 = vadd.f32 %v60, %v112
    %v114 = vpop.f32.mrb[0].mxu0
    %v115 = vpop.f32.mrb[0].mxu0
    %v116 = vadd.f32 %v60, %v115
    %v117 = vpop.f32.mrb[0].mxu0
    %118 = vdwg.mxu0
    %v119 = vpack.c.bf16 %v116, %v113
    %v121 = vunpack.c.l.b16 %v119
    %v122 = vunpack.c.h.b16 %v119
    %v123 = vpack.c.b16 %v121, %v121
    %v124 = vpack.c.b16 %v122, %v122
    %vm127 = vcmask 257024
    %128 = vst.msk [vmem:[#allocation7] sm:$0xf] %vm127, %v123
    %129 = vst.msk [vmem:[#allocation7 + $0x4] sm:$0xf] %vm127, %v124
    %130 = vrot.lane.b32.xlu0 %v123, 96
    %v131 = vpop.permute.xlu0 %130
    %132 = vrot.lane.b32.xlu0 %v124, 96
    %v133 = vpop.permute.xlu0 %132
    %136 = vst.msk [vmem:[#allocation8] sm:$0xf] %vm127, %v131
    %137 = vst.msk [vmem:[#allocation8 + $0x4] sm:$0xf] %vm127, %v133
    %138 = vrot.lane.b32.xlu0 %v123, 64
    %v139 = vpop.permute.xlu0 %138
    %140 = vrot.lane.b32.xlu0 %v124, 64
    %v141 = vpop.permute.xlu0 %140
    %144 = vst.msk [vmem:[#allocation10] sm:$0xf] %vm127, %v139
    %145 = vst.msk [vmem:[#allocation10 + $0x4] sm:$0xf] %vm127, %v141
    // Predicated region
    $region22: #{tpu_custom_call.1} parent=1 // pred_check
      _
    $region23: #{tpu_custom_call.1} parent=1 // pred_check_branch
      %147 = sbr.rel (0) target = $region25
    $region24: #{tpu_custom_call.1} parent=1 // pred_region
      %s149 = ssub.s32 128, 128
      %150 = vsyncadd [#allocation4], %s149
      %s151 = sshll.u32 [#allocation7], 4
      %s152 = int_to_ptr.vmem [resolvable:$true] %s151
      %157 = dma.vmem_to_hbm [thread:$0]  %s152, 128, %s3, [#allocation4], 64, 64, 4
    $region25: #{tpu_custom_call.1} parent=1 // pred_fallthru
      _
    // Predicated region
    $region26: #{tpu_custom_call.1} parent=1 // pred_check
      _
    $region27: #{tpu_custom_call.1} parent=1 // pred_check_branch
      %159 = sbr.rel (0) target = $region29
    $region28: #{tpu_custom_call.1} parent=1 // pred_region
      %s161 = ssub.s32 128, 128
      %162 = vsyncadd [#allocation9], %s161
      %s163 = sshll.u32 [#allocation8], 4
      %s164 = int_to_ptr.vmem [resolvable:$true] %s163
      %169 = dma.vmem_to_hbm [thread:$0]  %s164, 128, %s4, [#allocation9], 64, 64, 4
    $region29: #{tpu_custom_call.1} parent=1 // pred_fallthru
      _
    // Predicated region
    $region30: #{tpu_custom_call.1} parent=1 // pred_check
      _
    $region31: #{tpu_custom_call.1} parent=1 // pred_check_branch
      %171 = sbr.rel (0) target = $region33
    $region32: #{tpu_custom_call.1} parent=1 // pred_region
      %s173 = ssub.s32 128, 128
      %174 = vsyncadd [#allocation9], %s173
      %s175 = sshll.u32 [#allocation10], 4
      %s176 = int_to_ptr.vmem [resolvable:$true] %s175
      %181 = dma.vmem_to_hbm [thread:$0]  %s176, 128, %s5, [#allocation9], 64, 64, 4
    $region33: #{tpu_custom_call.1} parent=1 // pred_fallthru
      _
    // Predicated region
    $region34: #{tpu_custom_call.1} parent=1 // pred_check
      _
    $region35: #{tpu_custom_call.1} parent=1 // pred_check_branch
      %183 = sbr.rel (0) target = $region37
    $region36: #{tpu_custom_call.1} parent=1 // pred_region
      %184 = dma.done [#allocation4], 128
    $region37: #{tpu_custom_call.1} parent=1 // pred_fallthru
      _
    // Predicated region
    $region38: #{tpu_custom_call.1} parent=1 // pred_check
      _
    $region39: #{tpu_custom_call.1} parent=1 // pred_check_branch
      %186 = sbr.rel (0) target = $region41
    $region40: #{tpu_custom_call.1} parent=1 // pred_region
      %187 = dma.done [#allocation9], 128
    $region41: #{tpu_custom_call.1} parent=1 // pred_fallthru
      _
    // Predicated region
    $region42: #{tpu_custom_call.1} parent=1 // pred_check
      _
    $region43: #{tpu_custom_call.1} parent=1 // pred_check_branch
      %189 = sbr.rel (0) target = $region45
    $region44: #{tpu_custom_call.1} parent=1 // pred_region
      %190 = dma.done [#allocation9], 128
    $region45: #{tpu_custom_call.1} parent=1 // pred_fallthru
      _
    %191 = vsyncpa [#allocation3], 1
    %192 = vsyncpa [#allocation6], 1
    %193 = vsyncpa [#allocation4], 1
    %194 = vsyncpa [#allocation9], 1

</llo_original>
